<compile_context>
chip_gen: v6e
topology: v6e:2x2x1
jax: 0.10.0
libtpu: 0.0.40
codegen_flags: <defaults>
</compile_context>

<pallas_src>
import functools

import jax
import jax.numpy as jnp
import numpy as np
from jax import lax
from jax.experimental import pallas as pl
from jax.experimental.pallas import tpu as pltpu


def _make_lstm_kernel(B, T, H, static_unroll):
    """Builds the kernel body.

    Inputs (all VMEM, whole-array):
      whh_t_ref : (H, 4H)  recurrent weight, gate order [i, f, o, g],
                  g-gate columns pre-scaled by 2 (tanh-via-sigmoid fold)
      bias_ref  : (1, 4H)  b_ih + b_hh, same gate order / scaling
      h0_ref    : (B, H)
      c0_ref    : (B, H)
    Output:
      static path : (B, T*H)  -- one lane-dense store
      fori path   : (B, T, H) -- per-step dynamic-sublane store (long-T fallback)
    """

    def cell(h, c, w, bias_b):
        # Input is identically zero -> only the recurrent matmul remains.
        gates = jnp.dot(h.astype(w.dtype), w,
                        preferred_element_type=jnp.float32) + bias_b  # (B, 4H)
        # ONE full-width EUP sigmoid; g recovered via tanh(x) = 2*sigmoid(2x)-1
        # (the 2x is already folded into the weights/bias host-side).
        sig = jax.nn.sigmoid(gates)
        i_g = sig[:, 0 * H:1 * H]
        f_g = sig[:, 1 * H:2 * H]
        o_g = sig[:, 2 * H:3 * H]
        g_g = 2.0 * sig[:, 3 * H:4 * H] - 1.0          # VPU fixup, EUP-free
        c_new = f_g * c + i_g * g_g
        h_new = o_g * jnp.tanh(c_new)                  # 2nd (and last) EUP pass
        return h_new, c_new

    if static_unroll:
        def kernel(whh_t_ref, bias_ref, h0_ref, c0_ref, out_ref):
            w = whh_t_ref[...]                                    # small: hoist
            bias_b = jnp.broadcast_to(
                bias_ref[...].astype(jnp.float32), (B, 4 * H))    # hoisted
            h = h0_ref[...]
            c = c0_ref[...]
            hs = []
            for _ in range(T):                  # fully unrolled at trace time
                h, c = cell(h, c, w, bias_b)
                hs.append(h)
            # Single lane-dense bulk store: (B, T*H), T*H multiple of 128.
            out_ref[...] = jnp.concatenate(hs, axis=-1)
    else:
        def kernel(whh_t_ref, bias_ref, h0_ref, c0_ref, out_ref):
            bias_b = jnp.broadcast_to(
                bias_ref[...].astype(jnp.float32), (B, 4 * H))    # hoisted
            def step(t, carry):
                h, c = carry
                # Read W per step from VMEM (avoids vreg pinning at large H).
                h_new, c_new = cell(h, c, whh_t_ref[...], bias_b)
                # TODO(synk): masked per-step store; a T-chunk grid with
                # lane-dense per-chunk stores is the scalable version.
                out_ref[:, pl.ds(t, 1), :] = h_new[:, None, :]
                return h_new, c_new
            lax.fori_loop(0, T, step, (h0_ref[...], c0_ref[...]),
                          unroll=min(8, T))
    return kernel


def lstm_decoder_forward(sizes, steps, hidden, params, *,
                         use_bf16_matmul=False, max_static_unroll=64):
    """Mirrors LSTMDecoder.forward: zero input of length max(steps), run the
    LSTM, return preds of shape (B, T, H) (== preds.permute(1, 0, 2))."""
    S, B, Z = sizes
    T = int(max(steps))
    h0, c0 = hidden                      # each (num_layers=1, B, H)
    w_ih, w_hh, b_ih, b_hh = params      # (4H,Z), (4H,H), (4H,), (4H,)
    H = w_hh.shape[1]
    del w_ih  # zero input => x @ W_ih^T == 0; W_ih never touches the output.

    # bf16 only pays off when the matmul is MXU-throughput-bound.
    use_bf16_matmul = bool(use_bf16_matmul) and (H >= 256 and B >= 8)

    # Reorder PyTorch's [i, f, g, o] gate blocks to [i, f, o, g].
    def reorder(a):
        i, f, g, o = jnp.split(a, 4, axis=0)
        return jnp.concatenate([i, f, o, g], axis=0)

    whh = reorder(w_hh).astype(jnp.float32)                 # (4H, H)
    bias = reorder(b_ih + b_hh).astype(jnp.float32)         # (4H,)
    # Fold the g-gate tanh into the full-width sigmoid: tanh(x)=2*sigmoid(2x)-1.
    g_scale = jnp.concatenate([jnp.ones((3 * H,), jnp.float32),
                               jnp.full((H,), 2.0, jnp.float32)])
    whh = whh * g_scale[:, None]
    bias = bias * g_scale
    whh_t = whh.T                                           # (H, 4H)
    bias = bias.reshape(1, 4 * H)
    if use_bf16_matmul:
        whh_t = whh_t.astype(jnp.bfloat16)                  # f32 accum in-kernel

    static_unroll = T <= max_static_unroll
    if static_unroll:
        out_kernel_shape = (B, T * H)       # lane-dense single store
    else:
        out_kernel_shape = (B, T, H)

    # VMEM limit from the actual footprint (+ headroom), portable across the
    # 64 MiB (v7x) / 128 MiB (v5e/v6e) split.
    footprint = (whh_t.size * whh_t.dtype.itemsize
                 + bias.size * 4
                 + 2 * B * H * 4          # h0, c0
                 + B * T * H * 4)         # output
    vmem_limit = int(min(max(2 * footprint + (4 << 20), 8 << 20), 64 << 20))

    out = pl.pallas_call(
        _make_lstm_kernel(B, T, H, static_unroll),
        out_shape=jax.ShapeDtypeStruct(out_kernel_shape, jnp.float32),
        in_specs=[
            pl.BlockSpec(memory_space=pltpu.MemorySpace.VMEM),  # W_hh^T
            pl.BlockSpec(memory_space=pltpu.MemorySpace.VMEM),  # bias
            pl.BlockSpec(memory_space=pltpu.MemorySpace.VMEM),  # h0
            pl.BlockSpec(memory_space=pltpu.MemorySpace.VMEM),  # c0
        ],
        out_specs=pl.BlockSpec(memory_space=pltpu.MemorySpace.VMEM),
        compiler_params=pltpu.CompilerParams(vmem_limit_bytes=vmem_limit),
    )(whh_t, bias, h0[0], c0[0])

    if static_unroll:
        out = out.reshape(B, T, H)          # zero-cost (contiguous) reshape
    return out


def _reference_lstm(sizes, steps, hidden, params):
    """Pure-JAX reference (matches torch.nn.LSTM, num_layers=1, zero input)."""
    S, B, Z = sizes
    T = int(max(steps))
    h0, c0 = hidden
    w_ih, w_hh, b_ih, b_hh = params
    H = w_hh.shape[1]
    x = jnp.zeros((T, B, Z), dtype=jnp.float32)

    def step(carry, x_t):
        h, c = carry
        gates = x_t @ w_ih.T + b_ih + h @ w_hh.T + b_hh
        i = jax.nn.sigmoid(gates[:, 0 * H:1 * H])
        f = jax.nn.sigmoid(gates[:, 1 * H:2 * H])
        g = jnp.tanh(gates[:, 2 * H:3 * H])
        o = jax.nn.sigmoid(gates[:, 3 * H:4 * H])
        c_new = f * c + i * g
        h_new = o * jnp.tanh(c_new)
        return (h_new, c_new), h_new

    (_, _), ys = lax.scan(step, (h0[0], c0[0]), x)
    return jnp.transpose(ys, (1, 0, 2))


if __name__ == "__main__":
    # Small shapes consistent with the module.
    input_size = 4      # z
    hidden_size = 32    # H
    num_layers = 1
    B = 2
    steps = [5, 8, 3]           # max(steps) = 8 time steps
    sizes = (8, B, input_size)  # (S, B, z); S unused beyond unpacking

    key = jax.random.PRNGKey(0)
    k1, k2, k3, k4, k5, k6 = jax.random.split(key, 6)
    scale = 1.0 / np.sqrt(hidden_size)
    w_ih = jax.random.uniform(k1, (4 * hidden_size, input_size),
                              jnp.float32, -scale, scale)
    w_hh = jax.random.uniform(k2, (4 * hidden_size, hidden_size),
                              jnp.float32, -scale, scale)
    b_ih = jax.random.uniform(k3, (4 * hidden_size,), jnp.float32, -scale, scale)
    b_hh = jax.random.uniform(k4, (4 * hidden_size,), jnp.float32, -scale, scale)
    params = (w_ih, w_hh, b_ih, b_hh)

    h0 = jax.random.normal(k5, (num_layers, B, hidden_size), jnp.float32)
    c0 = jax.random.normal(k6, (num_layers, B, hidden_size), jnp.float32)
    hidden = (h0, c0)

    ref = _reference_lstm(sizes, steps, hidden, params)

    # Fast path (static unroll + single lane-dense store).
    preds = lstm_decoder_forward(sizes, steps, hidden, params)
    preds = jax.block_until_ready(preds)
    np.testing.assert_allclose(np.asarray(preds), np.asarray(ref),
                               rtol=5e-5, atol=5e-5)
    assert preds.shape == (B, max(steps), hidden_size)

    # Long-sequence fallback path (fori_loop, unroll=8) — exercised by forcing
    # the threshold down; must match the same reference.
    preds_loop = lstm_decoder_forward(sizes, steps, hidden, params,
                                      max_static_unroll=0)
    preds_loop = jax.block_until_ready(preds_loop)
    np.testing.assert_allclose(np.asarray(preds_loop), np.asarray(ref),
                               rtol=5e-5, atol=5e-5)

    print("KERNEL_OK")
</pallas_src>

<mosaic_0001>
module attributes {stable_mosaic.version = 11 : i64} {
  func.func @kernel(%arg0: memref<32x128xf32, #tpu.memory_space<vmem>>, %arg1: memref<1x128xf32, #tpu.memory_space<vmem>>, %arg2: memref<2x32xf32, #tpu.memory_space<vmem>>, %arg3: memref<2x32xf32, #tpu.memory_space<vmem>>, %arg4: memref<2x256xf32, #tpu.memory_space<vmem>>) attributes {dimension_semantics = [], scalar_prefetch = 0 : i64, scratch_operands = 0 : i64, tpu.core_type = #tpu.core_type<tc>} {
    %c0 = arith.constant 0 : index
    %c0_0 = arith.constant 0 : index
    %0 = vector.load %arg0[%c0, %c0_0] : memref<32x128xf32, #tpu.memory_space<vmem>>, vector<32x128xf32>
    %c0_1 = arith.constant 0 : index
    %c0_2 = arith.constant 0 : index
    %1 = vector.load %arg1[%c0_1, %c0_2] : memref<1x128xf32, #tpu.memory_space<vmem>>, vector<1x128xf32>
    %2 = vector.shape_cast %1 : vector<1x128xf32> to vector<1x128xf32>
    %3 = vector.broadcast %2 : vector<1x128xf32> to vector<2x128xf32>
    %c0_3 = arith.constant 0 : index
    %c0_4 = arith.constant 0 : index
    %4 = vector.load %arg2[%c0_3, %c0_4] : memref<2x32xf32, #tpu.memory_space<vmem>>, vector<2x32xf32>
    %c0_5 = arith.constant 0 : index
    %c0_6 = arith.constant 0 : index
    %5 = vector.load %arg3[%c0_5, %c0_6] : memref<2x32xf32, #tpu.memory_space<vmem>>, vector<2x32xf32>
    %cst = arith.constant dense<0.000000e+00> : vector<2x128xf32>
    %6 = tpu.matmul %4, %0, %cst {dimension_numbers = #tpu.dot_dimension_numbers<[1], [0], [0], [1], [0, 0, 1, 1], [], []>} : vector<2x32xf32>, vector<32x128xf32>, vector<2x128xf32> -> vector<2x128xf32>
    %7 = arith.addf %6, %3 : vector<2x128xf32>
    %8 = arith.negf %7 : vector<2x128xf32>
    %9 = math.exp %8 : vector<2x128xf32>
    %cst_7 = arith.constant 1.000000e+00 : f32
    %10 = vector.broadcast %cst_7 : f32 to vector<2x128xf32>
    %11 = arith.addf %10, %9 : vector<2x128xf32>
    %12 = arith.divf %10, %11 : vector<2x128xf32>
    %13 = vector.extract_strided_slice %12 {offsets = [0, 0], sizes = [2, 32], strides = [1, 1]} : vector<2x128xf32> to vector<2x32xf32>
    %14 = vector.extract_strided_slice %12 {offsets = [0, 32], sizes = [2, 32], strides = [1, 1]} : vector<2x128xf32> to vector<2x32xf32>
    %15 = vector.extract_strided_slice %12 {offsets = [0, 64], sizes = [2, 32], strides = [1, 1]} : vector<2x128xf32> to vector<2x32xf32>
    %16 = vector.extract_strided_slice %12 {offsets = [0, 96], sizes = [2, 32], strides = [1, 1]} : vector<2x128xf32> to vector<2x32xf32>
    %cst_8 = arith.constant 2.000000e+00 : f32
    %17 = vector.broadcast %cst_8 : f32 to vector<2x32xf32>
    %18 = arith.mulf %17, %16 : vector<2x32xf32>
    %cst_9 = arith.constant 1.000000e+00 : f32
    %19 = vector.broadcast %cst_9 : f32 to vector<2x32xf32>
    %20 = arith.subf %18, %19 : vector<2x32xf32>
    %21 = arith.mulf %14, %5 : vector<2x32xf32>
    %22 = arith.mulf %13, %20 : vector<2x32xf32>
    %23 = arith.addf %21, %22 : vector<2x32xf32>
    %24 = math.tanh %23 : vector<2x32xf32>
    %25 = arith.mulf %15, %24 : vector<2x32xf32>
    %cst_10 = arith.constant dense<0.000000e+00> : vector<2x128xf32>
    %26 = tpu.matmul %25, %0, %cst_10 {dimension_numbers = #tpu.dot_dimension_numbers<[1], [0], [0], [1], [0, 0, 1, 1], [], []>} : vector<2x32xf32>, vector<32x128xf32>, vector<2x128xf32> -> vector<2x128xf32>
    %27 = arith.addf %26, %3 : vector<2x128xf32>
    %28 = arith.negf %27 : vector<2x128xf32>
    %29 = math.exp %28 : vector<2x128xf32>
    %cst_11 = arith.constant 1.000000e+00 : f32
    %30 = vector.broadcast %cst_11 : f32 to vector<2x128xf32>
    %31 = arith.addf %30, %29 : vector<2x128xf32>
    %32 = arith.divf %30, %31 : vector<2x128xf32>
    %33 = vector.extract_strided_slice %32 {offsets = [0, 0], sizes = [2, 32], strides = [1, 1]} : vector<2x128xf32> to vector<2x32xf32>
    %34 = vector.extract_strided_slice %32 {offsets = [0, 32], sizes = [2, 32], strides = [1, 1]} : vector<2x128xf32> to vector<2x32xf32>
    %35 = vector.extract_strided_slice %32 {offsets = [0, 64], sizes = [2, 32], strides = [1, 1]} : vector<2x128xf32> to vector<2x32xf32>
    %36 = vector.extract_strided_slice %32 {offsets = [0, 96], sizes = [2, 32], strides = [1, 1]} : vector<2x128xf32> to vector<2x32xf32>
    %cst_12 = arith.constant 2.000000e+00 : f32
    %37 = vector.broadcast %cst_12 : f32 to vector<2x32xf32>
    %38 = arith.mulf %37, %36 : vector<2x32xf32>
    %cst_13 = arith.constant 1.000000e+00 : f32
    %39 = vector.broadcast %cst_13 : f32 to vector<2x32xf32>
    %40 = arith.subf %38, %39 : vector<2x32xf32>
    %41 = arith.mulf %34, %23 : vector<2x32xf32>
    %42 = arith.mulf %33, %40 : vector<2x32xf32>
    %43 = arith.addf %41, %42 : vector<2x32xf32>
    %44 = math.tanh %43 : vector<2x32xf32>
    %45 = arith.mulf %35, %44 : vector<2x32xf32>
    %cst_14 = arith.constant dense<0.000000e+00> : vector<2x128xf32>
    %46 = tpu.matmul %45, %0, %cst_14 {dimension_numbers = #tpu.dot_dimension_numbers<[1], [0], [0], [1], [0, 0, 1, 1], [], []>} : vector<2x32xf32>, vector<32x128xf32>, vector<2x128xf32> -> vector<2x128xf32>
    %47 = arith.addf %46, %3 : vector<2x128xf32>
    %48 = arith.negf %47 : vector<2x128xf32>
    %49 = math.exp %48 : vector<2x128xf32>
    %cst_15 = arith.constant 1.000000e+00 : f32
    %50 = vector.broadcast %cst_15 : f32 to vector<2x128xf32>
    %51 = arith.addf %50, %49 : vector<2x128xf32>
    %52 = arith.divf %50, %51 : vector<2x128xf32>
    %53 = vector.extract_strided_slice %52 {offsets = [0, 0], sizes = [2, 32], strides = [1, 1]} : vector<2x128xf32> to vector<2x32xf32>
    %54 = vector.extract_strided_slice %52 {offsets = [0, 32], sizes = [2, 32], strides = [1, 1]} : vector<2x128xf32> to vector<2x32xf32>
    %55 = vector.extract_strided_slice %52 {offsets = [0, 64], sizes = [2, 32], strides = [1, 1]} : vector<2x128xf32> to vector<2x32xf32>
    %56 = vector.extract_strided_slice %52 {offsets = [0, 96], sizes = [2, 32], strides = [1, 1]} : vector<2x128xf32> to vector<2x32xf32>
    %cst_16 = arith.constant 2.000000e+00 : f32
    %57 = vector.broadcast %cst_16 : f32 to vector<2x32xf32>
    %58 = arith.mulf %57, %56 : vector<2x32xf32>
    %cst_17 = arith.constant 1.000000e+00 : f32
    %59 = vector.broadcast %cst_17 : f32 to vector<2x32xf32>
    %60 = arith.subf %58, %59 : vector<2x32xf32>
    %61 = arith.mulf %54, %43 : vector<2x32xf32>
    %62 = arith.mulf %53, %60 : vector<2x32xf32>
    %63 = arith.addf %61, %62 : vector<2x32xf32>
    %64 = math.tanh %63 : vector<2x32xf32>
    %65 = arith.mulf %55, %64 : vector<2x32xf32>
    %cst_18 = arith.constant dense<0.000000e+00> : vector<2x128xf32>
    %66 = tpu.matmul %65, %0, %cst_18 {dimension_numbers = #tpu.dot_dimension_numbers<[1], [0], [0], [1], [0, 0, 1, 1], [], []>} : vector<2x32xf32>, vector<32x128xf32>, vector<2x128xf32> -> vector<2x128xf32>
    %67 = arith.addf %66, %3 : vector<2x128xf32>
    %68 = arith.negf %67 : vector<2x128xf32>
    %69 = math.exp %68 : vector<2x128xf32>
    %cst_19 = arith.constant 1.000000e+00 : f32
    %70 = vector.broadcast %cst_19 : f32 to vector<2x128xf32>
    %71 = arith.addf %70, %69 : vector<2x128xf32>
    %72 = arith.divf %70, %71 : vector<2x128xf32>
    %73 = vector.extract_strided_slice %72 {offsets = [0, 0], sizes = [2, 32], strides = [1, 1]} : vector<2x128xf32> to vector<2x32xf32>
    %74 = vector.extract_strided_slice %72 {offsets = [0, 32], sizes = [2, 32], strides = [1, 1]} : vector<2x128xf32> to vector<2x32xf32>
    %75 = vector.extract_strided_slice %72 {offsets = [0, 64], sizes = [2, 32], strides = [1, 1]} : vector<2x128xf32> to vector<2x32xf32>
    %76 = vector.extract_strided_slice %72 {offsets = [0, 96], sizes = [2, 32], strides = [1, 1]} : vector<2x128xf32> to vector<2x32xf32>
    %cst_20 = arith.constant 2.000000e+00 : f32
    %77 = vector.broadcast %cst_20 : f32 to vector<2x32xf32>
    %78 = arith.mulf %77, %76 : vector<2x32xf32>
    %cst_21 = arith.constant 1.000000e+00 : f32
    %79 = vector.broadcast %cst_21 : f32 to vector<2x32xf32>
    %80 = arith.subf %78, %79 : vector<2x32xf32>
    %81 = arith.mulf %74, %63 : vector<2x32xf32>
    %82 = arith.mulf %73, %80 : vector<2x32xf32>
    %83 = arith.addf %81, %82 : vector<2x32xf32>
    %84 = math.tanh %83 : vector<2x32xf32>
    %85 = arith.mulf %75, %84 : vector<2x32xf32>
    %cst_22 = arith.constant dense<0.000000e+00> : vector<2x128xf32>
    %86 = tpu.matmul %85, %0, %cst_22 {dimension_numbers = #tpu.dot_dimension_numbers<[1], [0], [0], [1], [0, 0, 1, 1], [], []>} : vector<2x32xf32>, vector<32x128xf32>, vector<2x128xf32> -> vector<2x128xf32>
    %87 = arith.addf %86, %3 : vector<2x128xf32>
    %88 = arith.negf %87 : vector<2x128xf32>
    %89 = math.exp %88 : vector<2x128xf32>
    %cst_23 = arith.constant 1.000000e+00 : f32
    %90 = vector.broadcast %cst_23 : f32 to vector<2x128xf32>
    %91 = arith.addf %90, %89 : vector<2x128xf32>
    %92 = arith.divf %90, %91 : vector<2x128xf32>
    %93 = vector.extract_strided_slice %92 {offsets = [0, 0], sizes = [2, 32], strides = [1, 1]} : vector<2x128xf32> to vector<2x32xf32>
    %94 = vector.extract_strided_slice %92 {offsets = [0, 32], sizes = [2, 32], strides = [1, 1]} : vector<2x128xf32> to vector<2x32xf32>
    %95 = vector.extract_strided_slice %92 {offsets = [0, 64], sizes = [2, 32], strides = [1, 1]} : vector<2x128xf32> to vector<2x32xf32>
    %96 = vector.extract_strided_slice %92 {offsets = [0, 96], sizes = [2, 32], strides = [1, 1]} : vector<2x128xf32> to vector<2x32xf32>
    %cst_24 = arith.constant 2.000000e+00 : f32
    %97 = vector.broadcast %cst_24 : f32 to vector<2x32xf32>
    %98 = arith.mulf %97, %96 : vector<2x32xf32>
    %cst_25 = arith.constant 1.000000e+00 : f32
    %99 = vector.broadcast %cst_25 : f32 to vector<2x32xf32>
    %100 = arith.subf %98, %99 : vector<2x32xf32>
    %101 = arith.mulf %94, %83 : vector<2x32xf32>
    %102 = arith.mulf %93, %100 : vector<2x32xf32>
    %103 = arith.addf %101, %102 : vector<2x32xf32>
    %104 = math.tanh %103 : vector<2x32xf32>
    %105 = arith.mulf %95, %104 : vector<2x32xf32>
    %cst_26 = arith.constant dense<0.000000e+00> : vector<2x128xf32>
    %106 = tpu.matmul %105, %0, %cst_26 {dimension_numbers = #tpu.dot_dimension_numbers<[1], [0], [0], [1], [0, 0, 1, 1], [], []>} : vector<2x32xf32>, vector<32x128xf32>, vector<2x128xf32> -> vector<2x128xf32>
    %107 = arith.addf %106, %3 : vector<2x128xf32>
    %108 = arith.negf %107 : vector<2x128xf32>
    %109 = math.exp %108 : vector<2x128xf32>
    %cst_27 = arith.constant 1.000000e+00 : f32
    %110 = vector.broadcast %cst_27 : f32 to vector<2x128xf32>
    %111 = arith.addf %110, %109 : vector<2x128xf32>
    %112 = arith.divf %110, %111 : vector<2x128xf32>
    %113 = vector.extract_strided_slice %112 {offsets = [0, 0], sizes = [2, 32], strides = [1, 1]} : vector<2x128xf32> to vector<2x32xf32>
    %114 = vector.extract_strided_slice %112 {offsets = [0, 32], sizes = [2, 32], strides = [1, 1]} : vector<2x128xf32> to vector<2x32xf32>
    %115 = vector.extract_strided_slice %112 {offsets = [0, 64], sizes = [2, 32], strides = [1, 1]} : vector<2x128xf32> to vector<2x32xf32>
    %116 = vector.extract_strided_slice %112 {offsets = [0, 96], sizes = [2, 32], strides = [1, 1]} : vector<2x128xf32> to vector<2x32xf32>
    %cst_28 = arith.constant 2.000000e+00 : f32
    %117 = vector.broadcast %cst_28 : f32 to vector<2x32xf32>
    %118 = arith.mulf %117, %116 : vector<2x32xf32>
    %cst_29 = arith.constant 1.000000e+00 : f32
    %119 = vector.broadcast %cst_29 : f32 to vector<2x32xf32>
    %120 = arith.subf %118, %119 : vector<2x32xf32>
    %121 = arith.mulf %114, %103 : vector<2x32xf32>
    %122 = arith.mulf %113, %120 : vector<2x32xf32>
    %123 = arith.addf %121, %122 : vector<2x32xf32>
    %124 = math.tanh %123 : vector<2x32xf32>
    %125 = arith.mulf %115, %124 : vector<2x32xf32>
    %cst_30 = arith.constant dense<0.000000e+00> : vector<2x128xf32>
    %126 = tpu.matmul %125, %0, %cst_30 {dimension_numbers = #tpu.dot_dimension_numbers<[1], [0], [0], [1], [0, 0, 1, 1], [], []>} : vector<2x32xf32>, vector<32x128xf32>, vector<2x128xf32> -> vector<2x128xf32>
    %127 = arith.addf %126, %3 : vector<2x128xf32>
    %128 = arith.negf %127 : vector<2x128xf32>
    %129 = math.exp %128 : vector<2x128xf32>
    %cst_31 = arith.constant 1.000000e+00 : f32
    %130 = vector.broadcast %cst_31 : f32 to vector<2x128xf32>
    %131 = arith.addf %130, %129 : vector<2x128xf32>
    %132 = arith.divf %130, %131 : vector<2x128xf32>
    %133 = vector.extract_strided_slice %132 {offsets = [0, 0], sizes = [2, 32], strides = [1, 1]} : vector<2x128xf32> to vector<2x32xf32>
    %134 = vector.extract_strided_slice %132 {offsets = [0, 32], sizes = [2, 32], strides = [1, 1]} : vector<2x128xf32> to vector<2x32xf32>
    %135 = vector.extract_strided_slice %132 {offsets = [0, 64], sizes = [2, 32], strides = [1, 1]} : vector<2x128xf32> to vector<2x32xf32>
    %136 = vector.extract_strided_slice %132 {offsets = [0, 96], sizes = [2, 32], strides = [1, 1]} : vector<2x128xf32> to vector<2x32xf32>
    %cst_32 = arith.constant 2.000000e+00 : f32
    %137 = vector.broadcast %cst_32 : f32 to vector<2x32xf32>
    %138 = arith.mulf %137, %136 : vector<2x32xf32>
    %cst_33 = arith.constant 1.000000e+00 : f32
    %139 = vector.broadcast %cst_33 : f32 to vector<2x32xf32>
    %140 = arith.subf %138, %139 : vector<2x32xf32>
    %141 = arith.mulf %134, %123 : vector<2x32xf32>
    %142 = arith.mulf %133, %140 : vector<2x32xf32>
    %143 = arith.addf %141, %142 : vector<2x32xf32>
    %144 = math.tanh %143 : vector<2x32xf32>
    %145 = arith.mulf %135, %144 : vector<2x32xf32>
    %cst_34 = arith.constant dense<0.000000e+00> : vector<2x128xf32>
    %146 = tpu.matmul %145, %0, %cst_34 {dimension_numbers = #tpu.dot_dimension_numbers<[1], [0], [0], [1], [0, 0, 1, 1], [], []>} : vector<2x32xf32>, vector<32x128xf32>, vector<2x128xf32> -> vector<2x128xf32>
    %147 = arith.addf %146, %3 : vector<2x128xf32>
    %148 = arith.negf %147 : vector<2x128xf32>
    %149 = math.exp %148 : vector<2x128xf32>
    %cst_35 = arith.constant 1.000000e+00 : f32
    %150 = vector.broadcast %cst_35 : f32 to vector<2x128xf32>
    %151 = arith.addf %150, %149 : vector<2x128xf32>
    %152 = arith.divf %150, %151 : vector<2x128xf32>
    %153 = vector.extract_strided_slice %152 {offsets = [0, 0], sizes = [2, 32], strides = [1, 1]} : vector<2x128xf32> to vector<2x32xf32>
    %154 = vector.extract_strided_slice %152 {offsets = [0, 32], sizes = [2, 32], strides = [1, 1]} : vector<2x128xf32> to vector<2x32xf32>
    %155 = vector.extract_strided_slice %152 {offsets = [0, 64], sizes = [2, 32], strides = [1, 1]} : vector<2x128xf32> to vector<2x32xf32>
    %156 = vector.extract_strided_slice %152 {offsets = [0, 96], sizes = [2, 32], strides = [1, 1]} : vector<2x128xf32> to vector<2x32xf32>
    %cst_36 = arith.constant 2.000000e+00 : f32
    %157 = vector.broadcast %cst_36 : f32 to vector<2x32xf32>
    %158 = arith.mulf %157, %156 : vector<2x32xf32>
    %cst_37 = arith.constant 1.000000e+00 : f32
    %159 = vector.broadcast %cst_37 : f32 to vector<2x32xf32>
    %160 = arith.subf %158, %159 : vector<2x32xf32>
    %161 = arith.mulf %154, %143 : vector<2x32xf32>
    %162 = arith.mulf %153, %160 : vector<2x32xf32>
    %163 = arith.addf %161, %162 : vector<2x32xf32>
    %164 = math.tanh %163 : vector<2x32xf32>
    %165 = arith.mulf %155, %164 : vector<2x32xf32>
    %166 = tpu.concatenate %25, %45, %65, %85, %105, %125, %145, %165 in 1 : vector<2x32xf32>, vector<2x32xf32>, vector<2x32xf32>, vector<2x32xf32>, vector<2x32xf32>, vector<2x32xf32>, vector<2x32xf32>, vector<2x32xf32> -> vector<2x256xf32>
    %c0_38 = arith.constant 0 : index
    %c0_39 = arith.constant 0 : index
    %167 = vector.load %arg4[%c0_38, %c0_39] : memref<2x256xf32, #tpu.memory_space<vmem>>, vector<2x256xf32>
    tpu.vector_store %arg4[%c0_38, %c0_39], %166 {strides = array<i32>} : memref<2x256xf32, #tpu.memory_space<vmem>>, vector<2x256xf32>,
    return
  }
}

</mosaic_0001>

<llo_original>
// kernel: tpu_custom_call.1
$region0: #{tpu_custom_call.1}
  #allocation0 [shape = 'u32[]', space=smem, size = 0x4, offset = 0x4, fixed_abs, tag = 'smem constant byte address 0x4 - core index']
  #allocation1 [shape = 'u32[144,128]{1,0:T(1,128)}', space=vmem, size = 0x12000, scoped, tag = 'internal scratch']
  %s0 = inlined_call_operand.hbm [shape: f32[32,128], index: 0, kind: input, shape index: {}]
  %s1 = inlined_call_operand.vmem [shape: f32[1,128], index: 1, kind: input, shape index: {}]
  %s2 = inlined_call_operand.vmem [shape: f32[2,32], index: 2, kind: input, shape index: {}]
  %s3 = inlined_call_operand.vmem [shape: f32[2,32], index: 3, kind: input, shape index: {}]
  %s4 = inlined_call_operand.hbm [shape: f32[2,256], index: 4, kind: output, shape index: {}]
  %s5 = sld [smem:[#allocation0]]
  $region30: #{tpu_custom_call.1} parent=0
    _
  %s7 = ssub.s32 1, %s5
  %s8 = scalar_select 0, %s7, %s5
  $region1: #{tpu_custom_call.1} parent=0
    #allocation2 [shape = 'u8[16384]{0}', space=vmem, size = 0x4000, scoped, tag = 'input window, operand 0, single buffered']
    #allocation3 [shape = 's32[1]{0}', space=sflag, size = 0x4, scoped, tag = 'scoped memory for tpu_custom_call.1']
    #allocation4 [shape = 's32[1]{0}', space=sflag, size = 0x4, scoped, tag = 'scoped memory for tpu_custom_call.1']
    #allocation5 [shape = 'u8[2048]{0}', space=vmem, size = 0x800, scoped, tag = 'output window, operand 0, single buffered']
    %9 = vsyncpa [#allocation3], 0
    %10 = vsyncpa [#allocation4], 0
    // Predicated region
    $region2: #{tpu_custom_call.1} parent=1 // pred_check
      _
    $region3: #{tpu_custom_call.1} parent=1 // pred_check_branch
      %12 = sbr.rel (0) target = $region5
    $region4: #{tpu_custom_call.1} parent=1 // pred_region
      %s14 = ssub.s32 512, 512
      %15 = vsyncadd [#allocation3], %s14
      %s16 = sshll.u32 [#allocation2], 4
      %s17 = int_to_ptr.vmem [resolvable:$true] %s16
      %22 = dma.hbm_to_vmem [thread:$0]  %s0, 512, %s17, [#allocation3], 128, 128, 8
    $region5: #{tpu_custom_call.1} parent=1 // pred_fallthru
      _
    // Predicated region
    $region6: #{tpu_custom_call.1} parent=1 // pred_check
      _
    $region7: #{tpu_custom_call.1} parent=1 // pred_check_branch
      %24 = sbr.rel (0) target = $region9
    $region8: #{tpu_custom_call.1} parent=1 // pred_region
      _
    $region9: #{tpu_custom_call.1} parent=1 // pred_fallthru
      _
    // Predicated region
    $region10: #{tpu_custom_call.1} parent=1 // pred_check
      _
    $region11: #{tpu_custom_call.1} parent=1 // pred_check_branch
      %26 = sbr.rel (0) target = $region13
    $region12: #{tpu_custom_call.1} parent=1 // pred_region
      _
    $region13: #{tpu_custom_call.1} parent=1 // pred_fallthru
      _
    // Predicated region
    $region14: #{tpu_custom_call.1} parent=1 // pred_check
      _
    $region15: #{tpu_custom_call.1} parent=1 // pred_check_branch
      %28 = sbr.rel (0) target = $region17
    $region16: #{tpu_custom_call.1} parent=1 // pred_region
      _
    $region17: #{tpu_custom_call.1} parent=1 // pred_fallthru
      _
    // Predicated region
    $region18: #{tpu_custom_call.1} parent=1 // pred_check
      _
    $region19: #{tpu_custom_call.1} parent=1 // pred_check_branch
      %30 = sbr.rel (0) target = $region21
    $region20: #{tpu_custom_call.1} parent=1 // pred_region
      %31 = dma.done [#allocation3], 512
    $region21: #{tpu_custom_call.1} parent=1 // pred_fallthru
      _
    %v32 = vld [vmem:[#allocation2] sm:$0xff]
    %v33 = vld [vmem:[#allocation2 + $0x8] sm:$0xff]
    %v34 = vld [vmem:[#allocation2 + $0x10] sm:$0xff]
    %v35 = vld [vmem:[#allocation2 + $0x18] sm:$0xff]
    %v36 = vld [vmem:[%s1] sm:$0x1]
    %v38 = vlaneseq
    %v39 = vshrl.u32 %v38, 7
    %v40 = vsub.s32 0, %v39
    %v41 = vrot.slane %v36, %v40
    %v43 = vld [vmem:[%s2] sm:$0x3]
    %v44 = vld [vmem:[%s3] sm:$0x3]
    %vm45 = vcmask 261120
    %v47 = vsel %vm45, %v43, 0
    %49 = vmatprep.subr.mxu0 0.0
    %50 = vmatpush1.msra.mxu0 0.0
    %51 = vmatprep.subr.mxu0 0.0
    %52 = vmatpush1.msra.mxu0 0.0
    %53 = vmatprep.subr.mxu0 0.0
    %54 = vmatpush1.msra.mxu0 0.0
    %55 = vmatprep.subr.mxu0 0.0
    %56 = vmatpush1.msra.mxu0 0.0
    %57 = vmatprep.subr.mxu0 0.0
    %58 = vmatpush1.msra.mxu0 0.0
    %59 = vmatprep.subr.mxu0 0.0
    %60 = vmatpush1.msra.mxu0 0.0
    %61 = vmatprep.subr.mxu0 0.0
    %62 = vmatpush1.msra.mxu0 0.0
    %63 = vmatprep.subr.mxu0 0.0
    %64 = vmatpush1.msra.mxu0 0.0
    %65 = vmatprep.subr.mxu0 0.0
    %66 = vmatpush1.msra.mxu0 0.0
    %67 = vmatprep.subr.mxu0 0.0
    %68 = vmatpush1.msra.mxu0 0.0
    %69 = vmatprep.subr.mxu0 0.0
    %70 = vmatpush1.msra.mxu0 0.0
    %71 = vmatprep.subr.mxu0 0.0
    %72 = vmatpush1.msra.mxu0 0.0
    %73 = vmatprep.subr.mxu0 0.0
    %74 = vmatpush1.msra.mxu0 %v35
    %75 = vmatprep.subr.mxu0 0.0
    %76 = vmatpush1.msra.mxu0 %v34
    %77 = vmatprep.subr.mxu0 0.0
    %78 = vmatpush1.msra.mxu0 %v33
    %79 = vmatprep.subr.mxu0 0.0
    %80 = vmatpush1.msra.mxu0 %v32
    %81 = vmatprep.subr.mxu0 0.0
    %82 = vmatpush2.msra.mxu0 0.0
    %83 = vmatprep.subr.mxu0 0.0
    %84 = vmatpush2.msra.mxu0 0.0
    %85 = vmatprep.subr.mxu0 0.0
    %86 = vmatpush2.msra.mxu0 0.0
    %87 = vmatprep.subr.mxu0 0.0
    %88 = vmatpush2.msra.mxu0 0.0
    %89 = vmatprep.subr.mxu0 0.0
    %90 = vmatpush2.msra.mxu0 0.0
    %91 = vmatprep.subr.mxu0 0.0
    %92 = vmatpush2.msra.mxu0 0.0
    %93 = vmatprep.subr.mxu0 0.0
    %94 = vmatpush2.msra.mxu0 0.0
    %95 = vmatprep.subr.mxu0 0.0
    %96 = vmatpush2.msra.mxu0 0.0
    %97 = vmatprep.subr.mxu0 0.0
    %98 = vmatpush2.msra.mxu0 0.0
    %99 = vmatprep.subr.mxu0 0.0
    %100 = vmatpush2.msra.mxu0 0.0
    %101 = vmatprep.subr.mxu0 0.0
    %102 = vmatpush2.msra.mxu0 0.0
    %103 = vmatprep.subr.mxu0 0.0
    %104 = vmatpush2.msra.mxu0 0.0
    %105 = vmatprep.subr.mxu0 0.0
    %106 = vmatpush2.msra.mxu0 0.0
    %107 = vmatprep.subr.mxu0 0.0
    %108 = vmatpush2.msra.mxu0 0.0
    %109 = vmatprep.subr.mxu0 0.0
    %110 = vmatpush2.msra.mxu0 0.0
    %111 = vmatprep.subr.mxu0 0.0
    %112 = vmatpush2.msra.mxu0 0.0
    %113 = vmatprep.mubr.f32.mxu0 0.0
    %114 = vmatmul.mubr.f32.gmra.mxu0 %v47
    %v115 = vpop.f32.mrf.mxu0
    %v116 = vadd.f32 %v41, %v115
    %v117 = vpop.f32.mrf.mxu0
    %118 = vdwg.mxu0
    %v119 = vxor.u32 %v116, 2147483648
    %v120 = vmul.f32 %v119, 1.442695
    %v121 = vpow.pop %v120
    %v122 = vadd.f32 %v121, 1.0
    %v123 = vrcp.pop %v122
    %v124 = vmul.f32 1.0, %v123
    %v125 = vmul.f32 %v124, 2.0
    %v126 = vsub.f32 %v125, 1.0
    %128 = vrot.lane.b32.xlu0 %v44, 32
    %v129 = vpop.permute.xlu0 %128
    %v131 = vmul.f32 %v124, %v129
    %133 = vrot.lane.b32.xlu0 %v126, 32
    %v134 = vpop.permute.xlu0 %133
    %v136 = vmul.f32 %v124, %v134
    %138 = vrot.lane.b32.xlu0 %v136, 32
    %v139 = vpop.permute.xlu0 %138
    %v141 = vadd.f32 %v131, %v139
    %v142 = vtanh.pop %v141
    %144 = vrot.lane.b32.xlu0 %v142, 32
    %v145 = vpop.permute.xlu0 %144
    %v147 = vmul.f32 %v124, %v145
    %149 = vrot.lane.b32.xlu0 %v147, 64
    %v150 = vpop.permute.xlu0 %149
    %v151 = vsel %vm45, %v150, 0
    %153 = vmatprep.subr.mxu0 0.0
    %154 = vmatpush1.msra.mxu0 0.0
    %155 = vmatprep.subr.mxu0 0.0
    %156 = vmatpush1.msra.mxu0 0.0
    %157 = vmatprep.subr.mxu0 0.0
    %158 = vmatpush1.msra.mxu0 0.0
    %159 = vmatprep.subr.mxu0 0.0
    %160 = vmatpush1.msra.mxu0 0.0
    %161 = vmatprep.subr.mxu0 0.0
    %162 = vmatpush1.msra.mxu0 0.0
    %163 = vmatprep.subr.mxu0 0.0
    %164 = vmatpush1.msra.mxu0 0.0
    %165 = vmatprep.subr.mxu0 0.0
    %166 = vmatpush1.msra.mxu0 0.0
    %167 = vmatprep.subr.mxu0 0.0
    %168 = vmatpush1.msra.mxu0 0.0
    %169 = vmatprep.subr.mxu0 0.0
    %170 = vmatpush1.msra.mxu0 0.0
    %171 = vmatprep.subr.mxu0 0.0
    %172 = vmatpush1.msra.mxu0 0.0
    %173 = vmatprep.subr.mxu0 0.0
    %174 = vmatpush1.msra.mxu0 0.0
    %175 = vmatprep.subr.mxu0 0.0
    %176 = vmatpush1.msra.mxu0 0.0
    %177 = vmatprep.subr.mxu0 0.0
    %178 = vmatpush1.msra.mxu0 %v35
    %179 = vmatprep.subr.mxu0 0.0
    %180 = vmatpush1.msra.mxu0 %v34
    %181 = vmatprep.subr.mxu0 0.0
    %182 = vmatpush1.msra.mxu0 %v33
    %183 = vmatprep.subr.mxu0 0.0
    %184 = vmatpush1.msra.mxu0 %v32
    %185 = vmatprep.subr.mxu0 0.0
    %186 = vmatpush2.msra.mxu0 0.0
    %187 = vmatprep.subr.mxu0 0.0
    %188 = vmatpush2.msra.mxu0 0.0
    %189 = vmatprep.subr.mxu0 0.0
    %190 = vmatpush2.msra.mxu0 0.0
    %191 = vmatprep.subr.mxu0 0.0
    %192 = vmatpush2.msra.mxu0 0.0
    %193 = vmatprep.subr.mxu0 0.0
    %194 = vmatpush2.msra.mxu0 0.0
    %195 = vmatprep.subr.mxu0 0.0
    %196 = vmatpush2.msra.mxu0 0.0
    %197 = vmatprep.subr.mxu0 0.0
    %198 = vmatpush2.msra.mxu0 0.0
    %199 = vmatprep.subr.mxu0 0.0
    %200 = vmatpush2.msra.mxu0 0.0
    %201 = vmatprep.subr.mxu0 0.0
    %202 = vmatpush2.msra.mxu0 0.0
    %203 = vmatprep.subr.mxu0 0.0
    %204 = vmatpush2.msra.mxu0 0.0
    %205 = vmatprep.subr.mxu0 0.0
    %206 = vmatpush2.msra.mxu0 0.0
    %207 = vmatprep.subr.mxu0 0.0
    %208 = vmatpush2.msra.mxu0 0.0
    %209 = vmatprep.subr.mxu0 0.0
    %210 = vmatpush2.msra.mxu0 0.0
    %211 = vmatprep.subr.mxu0 0.0
    %212 = vmatpush2.msra.mxu0 0.0
    %213 = vmatprep.subr.mxu0 0.0
    %214 = vmatpush2.msra.mxu0 0.0
    %215 = vmatprep.subr.mxu0 0.0
    %216 = vmatpush2.msra.mxu0 0.0
    %217 = vmatprep.mubr.f32.mxu0 0.0
    %218 = vmatmul.mubr.f32.gmra.mxu0 %v151
    %v219 = vpop.f32.mrf.mxu0
    %v220 = vadd.f32 %v41, %v219
    %v221 = vpop.f32.mrf.mxu0
    %222 = vdwg.mxu0
    %v223 = vxor.u32 %v220, 2147483648
    %v224 = vmul.f32 %v223, 1.442695
    %v225 = vpow.pop %v224
    %v226 = vadd.f32 %v225, 1.0
    %v227 = vrcp.pop %v226
    %v228 = vmul.f32 1.0, %v227
    %v229 = vmul.f32 %v228, 2.0
    %v230 = vsub.f32 %v229, 1.0
    %v231 = vmul.f32 %v228, %v141
    %233 = vrot.lane.b32.xlu0 %v230, 32
    %v234 = vpop.permute.xlu0 %233
    %v236 = vmul.f32 %v228, %v234
    %238 = vrot.lane.b32.xlu0 %v236, 32
    %v239 = vpop.permute.xlu0 %238
    %v241 = vadd.f32 %v231, %v239
    %v242 = vtanh.pop %v241
    %244 = vrot.lane.b32.xlu0 %v242, 32
    %v245 = vpop.permute.xlu0 %244
    %v247 = vmul.f32 %v228, %v245
    %249 = vrot.lane.b32.xlu0 %v247, 64
    %v250 = vpop.permute.xlu0 %249
    %v251 = vsel %vm45, %v250, 0
    %253 = vmatprep.subr.mxu0 0.0
    %254 = vmatpush1.msra.mxu0 0.0
    %255 = vmatprep.subr.mxu0 0.0
    %256 = vmatpush1.msra.mxu0 0.0
    %257 = vmatprep.subr.mxu0 0.0
    %258 = vmatpush1.msra.mxu0 0.0
    %259 = vmatprep.subr.mxu0 0.0
    %260 = vmatpush1.msra.mxu0 0.0
    %261 = vmatprep.subr.mxu0 0.0
    %262 = vmatpush1.msra.mxu0 0.0
    %263 = vmatprep.subr.mxu0 0.0
    %264 = vmatpush1.msra.mxu0 0.0
    %265 = vmatprep.subr.mxu0 0.0
    %266 = vmatpush1.msra.mxu0 0.0
    %267 = vmatprep.subr.mxu0 0.0
    %268 = vmatpush1.msra.mxu0 0.0
    %269 = vmatprep.subr.mxu0 0.0
    %270 = vmatpush1.msra.mxu0 0.0
    %271 = vmatprep.subr.mxu0 0.0
    %272 = vmatpush1.msra.mxu0 0.0
    %273 = vmatprep.subr.mxu0 0.0
    %274 = vmatpush1.msra.mxu0 0.0
    %275 = vmatprep.subr.mxu0 0.0
    %276 = vmatpush1.msra.mxu0 0.0
    %277 = vmatprep.subr.mxu0 0.0
    %278 = vmatpush1.msra.mxu0 %v35
    %279 = vmatprep.subr.mxu0 0.0
    %280 = vmatpush1.msra.mxu0 %v34
    %281 = vmatprep.subr.mxu0 0.0
    %282 = vmatpush1.msra.mxu0 %v33
    %283 = vmatprep.subr.mxu0 0.0
    %284 = vmatpush1.msra.mxu0 %v32
    %285 = vmatprep.subr.mxu0 0.0
    %286 = vmatpush2.msra.mxu0 0.0
    %287 = vmatprep.subr.mxu0 0.0
    %288 = vmatpush2.msra.mxu0 0.0
    %289 = vmatprep.subr.mxu0 0.0
    %290 = vmatpush2.msra.mxu0 0.0
    %291 = vmatprep.subr.mxu0 0.0
    %292 = vmatpush2.msra.mxu0 0.0
    %293 = vmatprep.subr.mxu0 0.0
    %294 = vmatpush2.msra.mxu0 0.0
    %295 = vmatprep.subr.mxu0 0.0
    %296 = vmatpush2.msra.mxu0 0.0
    %297 = vmatprep.subr.mxu0 0.0
    %298 = vmatpush2.msra.mxu0 0.0
    %299 = vmatprep.subr.mxu0 0.0
    %300 = vmatpush2.msra.mxu0 0.0
    %301 = vmatprep.subr.mxu0 0.0
    %302 = vmatpush2.msra.mxu0 0.0
    %303 = vmatprep.subr.mxu0 0.0
    %304 = vmatpush2.msra.mxu0 0.0
    %305 = vmatprep.subr.mxu0 0.0
    %306 = vmatpush2.msra.mxu0 0.0
    %307 = vmatprep.subr.mxu0 0.0
    %308 = vmatpush2.msra.mxu0 0.0
    %309 = vmatprep.subr.mxu0 0.0
    %310 = vmatpush2.msra.mxu0 0.0
    %311 = vmatprep.subr.mxu0 0.0
    %312 = vmatpush2.msra.mxu0 0.0
    %313 = vmatprep.subr.mxu0 0.0
    %314 = vmatpush2.msra.mxu0 0.0
    %315 = vmatprep.subr.mxu0 0.0
    %316 = vmatpush2.msra.mxu0 0.0
    %317 = vmatprep.mubr.f32.mxu0 0.0
    %318 = vmatmul.mubr.f32.gmra.mxu0 %v251
    %v319 = vpop.f32.mrf.mxu0
    %v320 = vadd.f32 %v41, %v319
    %v321 = vpop.f32.mrf.mxu0
    %322 = vdwg.mxu0
    %v323 = vxor.u32 %v320, 2147483648
    %v324 = vmul.f32 %v323, 1.442695
    %v325 = vpow.pop %v324
    %v326 = vadd.f32 %v325, 1.0
    %v327 = vrcp.pop %v326
    %v328 = vmul.f32 1.0, %v327
    %v329 = vmul.f32 %v328, 2.0
    %v330 = vsub.f32 %v329, 1.0
    %v331 = vmul.f32 %v328, %v241
    %333 = vrot.lane.b32.xlu0 %v330, 32
    %v334 = vpop.permute.xlu0 %333
    %v336 = vmul.f32 %v328, %v334
    %338 = vrot.lane.b32.xlu0 %v336, 32
    %v339 = vpop.permute.xlu0 %338
    %v341 = vadd.f32 %v331, %v339
    %v342 = vtanh.pop %v341
    %344 = vrot.lane.b32.xlu0 %v342, 32
    %v345 = vpop.permute.xlu0 %344
    %v347 = vmul.f32 %v328, %v345
    %349 = vrot.lane.b32.xlu0 %v347, 64
    %v350 = vpop.permute.xlu0 %349
    %v351 = vsel %vm45, %v350, 0
    %353 = vmatprep.subr.mxu0 0.0
    %354 = vmatpush1.msra.mxu0 0.0
    %355 = vmatprep.subr.mxu0 0.0
    %356 = vmatpush1.msra.mxu0 0.0
    %357 = vmatprep.subr.mxu0 0.0
    %358 = vmatpush1.msra.mxu0 0.0
    %359 = vmatprep.subr.mxu0 0.0
    %360 = vmatpush1.msra.mxu0 0.0
    %361 = vmatprep.subr.mxu0 0.0
    %362 = vmatpush1.msra.mxu0 0.0
    %363 = vmatprep.subr.mxu0 0.0
    %364 = vmatpush1.msra.mxu0 0.0
    %365 = vmatprep.subr.mxu0 0.0
    %366 = vmatpush1.msra.mxu0 0.0
    %367 = vmatprep.subr.mxu0 0.0
    %368 = vmatpush1.msra.mxu0 0.0
    %369 = vmatprep.subr.mxu0 0.0
    %370 = vmatpush1.msra.mxu0 0.0
    %371 = vmatprep.subr.mxu0 0.0
    %372 = vmatpush1.msra.mxu0 0.0
    %373 = vmatprep.subr.mxu0 0.0
    %374 = vmatpush1.msra.mxu0 0.0
    %375 = vmatprep.subr.mxu0 0.0
    %376 = vmatpush1.msra.mxu0 0.0
    %377 = vmatprep.subr.mxu0 0.0
    %378 = vmatpush1.msra.mxu0 %v35
    %379 = vmatprep.subr.mxu0 0.0
    %380 = vmatpush1.msra.mxu0 %v34
    %381 = vmatprep.subr.mxu0 0.0
    %382 = vmatpush1.msra.mxu0 %v33
    %383 = vmatprep.subr.mxu0 0.0
    %384 = vmatpush1.msra.mxu0 %v32
    %385 = vmatprep.subr.mxu0 0.0
    %386 = vmatpush2.msra.mxu0 0.0
    %387 = vmatprep.subr.mxu0 0.0
    %388 = vmatpush2.msra.mxu0 0.0
    %389 = vmatprep.subr.mxu0 0.0
    %390 = vmatpush2.msra.mxu0 0.0
    %391 = vmatprep.subr.mxu0 0.0
    %392 = vmatpush2.msra.mxu0 0.0
    %393 = vmatprep.subr.mxu0 0.0
    %394 = vmatpush2.msra.mxu0 0.0
    %395 = vmatprep.subr.mxu0 0.0
    %396 = vmatpush2.msra.mxu0 0.0
    %397 = vmatprep.subr.mxu0 0.0
    %398 = vmatpush2.msra.mxu0 0.0
    %399 = vmatprep.subr.mxu0 0.0
    %400 = vmatpush2.msra.mxu0 0.0
    %401 = vmatprep.subr.mxu0 0.0
    %402 = vmatpush2.msra.mxu0 0.0
    %403 = vmatprep.subr.mxu0 0.0
    %404 = vmatpush2.msra.mxu0 0.0
    %405 = vmatprep.subr.mxu0 0.0
    %406 = vmatpush2.msra.mxu0 0.0
    %407 = vmatprep.subr.mxu0 0.0
    %408 = vmatpush2.msra.mxu0 0.0
    %409 = vmatprep.subr.mxu0 0.0
    %410 = vmatpush2.msra.mxu0 0.0
    %411 = vmatprep.subr.mxu0 0.0
    %412 = vmatpush2.msra.mxu0 0.0
    %413 = vmatprep.subr.mxu0 0.0
    %414 = vmatpush2.msra.mxu0 0.0
    %415 = vmatprep.subr.mxu0 0.0
    %416 = vmatpush2.msra.mxu0 0.0
    %417 = vmatprep.mubr.f32.mxu0 0.0
    %418 = vmatmul.mubr.f32.gmra.mxu0 %v351
    %v419 = vpop.f32.mrf.mxu0
    %v420 = vadd.f32 %v41, %v419
    %v421 = vpop.f32.mrf.mxu0
    %422 = vdwg.mxu0
    %v423 = vxor.u32 %v420, 2147483648
    %v424 = vmul.f32 %v423, 1.442695
    %v425 = vpow.pop %v424
    %v426 = vadd.f32 %v425, 1.0
    %v427 = vrcp.pop %v426
    %v428 = vmul.f32 1.0, %v427
    %v429 = vmul.f32 %v428, 2.0
    %v430 = vsub.f32 %v429, 1.0
    %v431 = vmul.f32 %v428, %v341
    %433 = vrot.lane.b32.xlu0 %v430, 32
    %v434 = vpop.permute.xlu0 %433
    %v436 = vmul.f32 %v428, %v434
    %438 = vrot.lane.b32.xlu0 %v436, 32
    %v439 = vpop.permute.xlu0 %438
    %v441 = vadd.f32 %v431, %v439
    %v442 = vtanh.pop %v441
    %444 = vrot.lane.b32.xlu0 %v442, 32
    %v445 = vpop.permute.xlu0 %444
    %v447 = vmul.f32 %v428, %v445
    %449 = vrot.lane.b32.xlu0 %v447, 64
    %v450 = vpop.permute.xlu0 %449
    %v451 = vsel %vm45, %v450, 0
    %453 = vmatprep.subr.mxu0 0.0
    %454 = vmatpush1.msra.mxu0 0.0
    %455 = vmatprep.subr.mxu0 0.0
    %456 = vmatpush1.msra.mxu0 0.0
    %457 = vmatprep.subr.mxu0 0.0
    %458 = vmatpush1.msra.mxu0 0.0
    %459 = vmatprep.subr.mxu0 0.0
    %460 = vmatpush1.msra.mxu0 0.0
    %461 = vmatprep.subr.mxu0 0.0
    %462 = vmatpush1.msra.mxu0 0.0
    %463 = vmatprep.subr.mxu0 0.0
    %464 = vmatpush1.msra.mxu0 0.0
    %465 = vmatprep.subr.mxu0 0.0
    %466 = vmatpush1.msra.mxu0 0.0
    %467 = vmatprep.subr.mxu0 0.0
    %468 = vmatpush1.msra.mxu0 0.0
    %469 = vmatprep.subr.mxu0 0.0
    %470 = vmatpush1.msra.mxu0 0.0
    %471 = vmatprep.subr.mxu0 0.0
    %472 = vmatpush1.msra.mxu0 0.0
    %473 = vmatprep.subr.mxu0 0.0
    %474 = vmatpush1.msra.mxu0 0.0
    %475 = vmatprep.subr.mxu0 0.0
    %476 = vmatpush1.msra.mxu0 0.0
    %477 = vmatprep.subr.mxu0 0.0
    %478 = vmatpush1.msra.mxu0 %v35
    %479 = vmatprep.subr.mxu0 0.0
    %480 = vmatpush1.msra.mxu0 %v34
    %481 = vmatprep.subr.mxu0 0.0
    %482 = vmatpush1.msra.mxu0 %v33
    %483 = vmatprep.subr.mxu0 0.0
    %484 = vmatpush1.msra.mxu0 %v32
    %485 = vmatprep.subr.mxu0 0.0
    %486 = vmatpush2.msra.mxu0 0.0
    %487 = vmatprep.subr.mxu0 0.0
    %488 = vmatpush2.msra.mxu0 0.0
    %489 = vmatprep.subr.mxu0 0.0
    %490 = vmatpush2.msra.mxu0 0.0
    %491 = vmatprep.subr.mxu0 0.0
    %492 = vmatpush2.msra.mxu0 0.0
    %493 = vmatprep.subr.mxu0 0.0
    %494 = vmatpush2.msra.mxu0 0.0
    %495 = vmatprep.subr.mxu0 0.0
    %496 = vmatpush2.msra.mxu0 0.0
    %497 = vmatprep.subr.mxu0 0.0
    %498 = vmatpush2.msra.mxu0 0.0
    %499 = vmatprep.subr.mxu0 0.0
    %500 = vmatpush2.msra.mxu0 0.0
    %501 = vmatprep.subr.mxu0 0.0
    %502 = vmatpush2.msra.mxu0 0.0
    %503 = vmatprep.subr.mxu0 0.0
    %504 = vmatpush2.msra.mxu0 0.0
    %505 = vmatprep.subr.mxu0 0.0
    %506 = vmatpush2.msra.mxu0 0.0
    %507 = vmatprep.subr.mxu0 0.0
    %508 = vmatpush2.msra.mxu0 0.0
    %509 = vmatprep.subr.mxu0 0.0
    %510 = vmatpush2.msra.mxu0 0.0
    %511 = vmatprep.subr.mxu0 0.0
    %512 = vmatpush2.msra.mxu0 0.0
    %513 = vmatprep.subr.mxu0 0.0
    %514 = vmatpush2.msra.mxu0 0.0
    %515 = vmatprep.subr.mxu0 0.0
    %516 = vmatpush2.msra.mxu0 0.0
    %517 = vmatprep.mubr.f32.mxu0 0.0
    %518 = vmatmul.mubr.f32.gmra.mxu0 %v451
    %v519 = vpop.f32.mrf.mxu0
    %v520 = vadd.f32 %v41, %v519
    %v521 = vpop.f32.mrf.mxu0
    %522 = vdwg.mxu0
    %v523 = vxor.u32 %v520, 2147483648
    %v524 = vmul.f32 %v523, 1.442695
    %v525 = vpow.pop %v524
    %v526 = vadd.f32 %v525, 1.0
    %v527 = vrcp.pop %v526
    %v528 = vmul.f32 1.0, %v527
    %v529 = vmul.f32 %v528, 2.0
    %v530 = vsub.f32 %v529, 1.0
    %v531 = vmul.f32 %v528, %v441
    %533 = vrot.lane.b32.xlu0 %v530, 32
    %v534 = vpop.permute.xlu0 %533
    %v536 = vmul.f32 %v528, %v534
    %538 = vrot.lane.b32.xlu0 %v536, 32
    %v539 = vpop.permute.xlu0 %538
    %v541 = vadd.f32 %v531, %v539
    %v542 = vtanh.pop %v541
    %544 = vrot.lane.b32.xlu0 %v542, 32
    %v545 = vpop.permute.xlu0 %544
    %v547 = vmul.f32 %v528, %v545
    %549 = vrot.lane.b32.xlu0 %v547, 64
    %v550 = vpop.permute.xlu0 %549
    %v551 = vsel %vm45, %v550, 0
    %553 = vmatprep.subr.mxu0 0.0
    %554 = vmatpush1.msra.mxu0 0.0
    %555 = vmatprep.subr.mxu0 0.0
    %556 = vmatpush1.msra.mxu0 0.0
    %557 = vmatprep.subr.mxu0 0.0
    %558 = vmatpush1.msra.mxu0 0.0
    %559 = vmatprep.subr.mxu0 0.0
    %560 = vmatpush1.msra.mxu0 0.0
    %561 = vmatprep.subr.mxu0 0.0
    %562 = vmatpush1.msra.mxu0 0.0
    %563 = vmatprep.subr.mxu0 0.0
    %564 = vmatpush1.msra.mxu0 0.0
    %565 = vmatprep.subr.mxu0 0.0
    %566 = vmatpush1.msra.mxu0 0.0
    %567 = vmatprep.subr.mxu0 0.0
    %568 = vmatpush1.msra.mxu0 0.0
    %569 = vmatprep.subr.mxu0 0.0
    %570 = vmatpush1.msra.mxu0 0.0
    %571 = vmatprep.subr.mxu0 0.0
    %572 = vmatpush1.msra.mxu0 0.0
    %573 = vmatprep.subr.mxu0 0.0
    %574 = vmatpush1.msra.mxu0 0.0
    %575 = vmatprep.subr.mxu0 0.0
    %576 = vmatpush1.msra.mxu0 0.0
    %577 = vmatprep.subr.mxu0 0.0
    %578 = vmatpush1.msra.mxu0 %v35
    %579 = vmatprep.subr.mxu0 0.0
    %580 = vmatpush1.msra.mxu0 %v34
    %581 = vmatprep.subr.mxu0 0.0
    %582 = vmatpush1.msra.mxu0 %v33
    %583 = vmatprep.subr.mxu0 0.0
    %584 = vmatpush1.msra.mxu0 %v32
    %585 = vmatprep.subr.mxu0 0.0
    %586 = vmatpush2.msra.mxu0 0.0
    %587 = vmatprep.subr.mxu0 0.0
    %588 = vmatpush2.msra.mxu0 0.0
    %589 = vmatprep.subr.mxu0 0.0
    %590 = vmatpush2.msra.mxu0 0.0
    %591 = vmatprep.subr.mxu0 0.0
    %592 = vmatpush2.msra.mxu0 0.0
    %593 = vmatprep.subr.mxu0 0.0
    %594 = vmatpush2.msra.mxu0 0.0
    %595 = vmatprep.subr.mxu0 0.0
    %596 = vmatpush2.msra.mxu0 0.0
    %597 = vmatprep.subr.mxu0 0.0
    %598 = vmatpush2.msra.mxu0 0.0
    %599 = vmatprep.subr.mxu0 0.0
    %600 = vmatpush2.msra.mxu0 0.0
    %601 = vmatprep.subr.mxu0 0.0
    %602 = vmatpush2.msra.mxu0 0.0
    %603 = vmatprep.subr.mxu0 0.0
    %604 = vmatpush2.msra.mxu0 0.0
    %605 = vmatprep.subr.mxu0 0.0
    %606 = vmatpush2.msra.mxu0 0.0
    %607 = vmatprep.subr.mxu0 0.0
    %608 = vmatpush2.msra.mxu0 0.0
    %609 = vmatprep.subr.mxu0 0.0
    %610 = vmatpush2.msra.mxu0 0.0
    %611 = vmatprep.subr.mxu0 0.0
    %612 = vmatpush2.msra.mxu0 0.0
    %613 = vmatprep.subr.mxu0 0.0
    %614 = vmatpush2.msra.mxu0 0.0
    %615 = vmatprep.subr.mxu0 0.0
    %616 = vmatpush2.msra.mxu0 0.0
    %617 = vmatprep.mubr.f32.mxu0 0.0
    %618 = vmatmul.mubr.f32.gmra.mxu0 %v551
    %v619 = vpop.f32.mrf.mxu0
    %v620 = vadd.f32 %v41, %v619
    %v621 = vpop.f32.mrf.mxu0
    %622 = vdwg.mxu0
    %v623 = vxor.u32 %v620, 2147483648
    %v624 = vmul.f32 %v623, 1.442695
    %v625 = vpow.pop %v624
    %v626 = vadd.f32 %v625, 1.0
    %v627 = vrcp.pop %v626
    %v628 = vmul.f32 1.0, %v627
    %v629 = vmul.f32 %v628, 2.0
    %v630 = vsub.f32 %v629, 1.0
    %v631 = vmul.f32 %v628, %v541
    %633 = vrot.lane.b32.xlu0 %v630, 32
    %v634 = vpop.permute.xlu0 %633
    %v636 = vmul.f32 %v628, %v634
    %638 = vrot.lane.b32.xlu0 %v636, 32
    %v639 = vpop.permute.xlu0 %638
    %v641 = vadd.f32 %v631, %v639
    %v642 = vtanh.pop %v641
    %644 = vrot.lane.b32.xlu0 %v642, 32
    %v645 = vpop.permute.xlu0 %644
    %v647 = vmul.f32 %v628, %v645
    %649 = vrot.lane.b32.xlu0 %v647, 64
    %v650 = vpop.permute.xlu0 %649
    %v651 = vsel %vm45, %v650, 0
    %653 = vmatprep.subr.mxu0 0.0
    %654 = vmatpush1.msra.mxu0 0.0
    %655 = vmatprep.subr.mxu0 0.0
    %656 = vmatpush1.msra.mxu0 0.0
    %657 = vmatprep.subr.mxu0 0.0
    %658 = vmatpush1.msra.mxu0 0.0
    %659 = vmatprep.subr.mxu0 0.0
    %660 = vmatpush1.msra.mxu0 0.0
    %661 = vmatprep.subr.mxu0 0.0
    %662 = vmatpush1.msra.mxu0 0.0
    %663 = vmatprep.subr.mxu0 0.0
    %664 = vmatpush1.msra.mxu0 0.0
    %665 = vmatprep.subr.mxu0 0.0
    %666 = vmatpush1.msra.mxu0 0.0
    %667 = vmatprep.subr.mxu0 0.0
    %668 = vmatpush1.msra.mxu0 0.0
    %669 = vmatprep.subr.mxu0 0.0
    %670 = vmatpush1.msra.mxu0 0.0
    %671 = vmatprep.subr.mxu0 0.0
    %672 = vmatpush1.msra.mxu0 0.0
    %673 = vmatprep.subr.mxu0 0.0
    %674 = vmatpush1.msra.mxu0 0.0
    %675 = vmatprep.subr.mxu0 0.0
    %676 = vmatpush1.msra.mxu0 0.0
    %677 = vmatprep.subr.mxu0 0.0
    %678 = vmatpush1.msra.mxu0 %v35
    %679 = vmatprep.subr.mxu0 0.0
    %680 = vmatpush1.msra.mxu0 %v34
    %681 = vmatprep.subr.mxu0 0.0
    %682 = vmatpush1.msra.mxu0 %v33
    %683 = vmatprep.subr.mxu0 0.0
    %684 = vmatpush1.msra.mxu0 %v32
    %685 = vmatprep.subr.mxu0 0.0
    %686 = vmatpush2.msra.mxu0 0.0
    %687 = vmatprep.subr.mxu0 0.0
    %688 = vmatpush2.msra.mxu0 0.0
    %689 = vmatprep.subr.mxu0 0.0
    %690 = vmatpush2.msra.mxu0 0.0
    %691 = vmatprep.subr.mxu0 0.0
    %692 = vmatpush2.msra.mxu0 0.0
    %693 = vmatprep.subr.mxu0 0.0
    %694 = vmatpush2.msra.mxu0 0.0
    %695 = vmatprep.subr.mxu0 0.0
    %696 = vmatpush2.msra.mxu0 0.0
    %697 = vmatprep.subr.mxu0 0.0
    %698 = vmatpush2.msra.mxu0 0.0
    %699 = vmatprep.subr.mxu0 0.0
    %700 = vmatpush2.msra.mxu0 0.0
    %701 = vmatprep.subr.mxu0 0.0
    %702 = vmatpush2.msra.mxu0 0.0
    %703 = vmatprep.subr.mxu0 0.0
    %704 = vmatpush2.msra.mxu0 0.0
    %705 = vmatprep.subr.mxu0 0.0
    %706 = vmatpush2.msra.mxu0 0.0
    %707 = vmatprep.subr.mxu0 0.0
    %708 = vmatpush2.msra.mxu0 0.0
    %709 = vmatprep.subr.mxu0 0.0
    %710 = vmatpush2.msra.mxu0 0.0
    %711 = vmatprep.subr.mxu0 0.0
    %712 = vmatpush2.msra.mxu0 0.0
    %713 = vmatprep.subr.mxu0 0.0
    %714 = vmatpush2.msra.mxu0 0.0
    %715 = vmatprep.subr.mxu0 0.0
    %716 = vmatpush2.msra.mxu0 0.0
    %717 = vmatprep.mubr.f32.mxu0 0.0
    %718 = vmatmul.mubr.f32.gmra.mxu0 %v651
    %v719 = vpop.f32.mrf.mxu0
    %v720 = vadd.f32 %v41, %v719
    %v721 = vpop.f32.mrf.mxu0
    %722 = vdwg.mxu0
    %v723 = vxor.u32 %v720, 2147483648
    %v724 = vmul.f32 %v723, 1.442695
    %v725 = vpow.pop %v724
    %v726 = vadd.f32 %v725, 1.0
    %v727 = vrcp.pop %v726
    %v728 = vmul.f32 1.0, %v727
    %v729 = vmul.f32 %v728, 2.0
    %v730 = vsub.f32 %v729, 1.0
    %v731 = vmul.f32 %v728, %v641
    %733 = vrot.lane.b32.xlu0 %v730, 32
    %v734 = vpop.permute.xlu0 %733
    %v736 = vmul.f32 %v728, %v734
    %738 = vrot.lane.b32.xlu0 %v736, 32
    %v739 = vpop.permute.xlu0 %738
    %v741 = vadd.f32 %v731, %v739
    %v742 = vtanh.pop %v741
    %744 = vrot.lane.b32.xlu0 %v742, 32
    %v745 = vpop.permute.xlu0 %744
    %v747 = vmul.f32 %v728, %v745
    %749 = vrot.lane.b32.xlu0 %v747, 64
    %v750 = vpop.permute.xlu0 %749
    %v751 = vsel %vm45, %v750, 0
    %753 = vmatprep.subr.mxu0 0.0
    %754 = vmatpush1.msra.mxu0 0.0
    %755 = vmatprep.subr.mxu0 0.0
    %756 = vmatpush1.msra.mxu0 0.0
    %757 = vmatprep.subr.mxu0 0.0
    %758 = vmatpush1.msra.mxu0 0.0
    %759 = vmatprep.subr.mxu0 0.0
    %760 = vmatpush1.msra.mxu0 0.0
    %761 = vmatprep.subr.mxu0 0.0
    %762 = vmatpush1.msra.mxu0 0.0
    %763 = vmatprep.subr.mxu0 0.0
    %764 = vmatpush1.msra.mxu0 0.0
    %765 = vmatprep.subr.mxu0 0.0
    %766 = vmatpush1.msra.mxu0 0.0
    %767 = vmatprep.subr.mxu0 0.0
    %768 = vmatpush1.msra.mxu0 0.0
    %769 = vmatprep.subr.mxu0 0.0
    %770 = vmatpush1.msra.mxu0 0.0
    %771 = vmatprep.subr.mxu0 0.0
    %772 = vmatpush1.msra.mxu0 0.0
    %773 = vmatprep.subr.mxu0 0.0
    %774 = vmatpush1.msra.mxu0 0.0
    %775 = vmatprep.subr.mxu0 0.0
    %776 = vmatpush1.msra.mxu0 0.0
    %777 = vmatprep.subr.mxu0 0.0
    %778 = vmatpush1.msra.mxu0 %v35
    %779 = vmatprep.subr.mxu0 0.0
    %780 = vmatpush1.msra.mxu0 %v34
    %781 = vmatprep.subr.mxu0 0.0
    %782 = vmatpush1.msra.mxu0 %v33
    %783 = vmatprep.subr.mxu0 0.0
    %784 = vmatpush1.msra.mxu0 %v32
    %785 = vmatprep.subr.mxu0 0.0
    %786 = vmatpush2.msra.mxu0 0.0
    %787 = vmatprep.subr.mxu0 0.0
    %788 = vmatpush2.msra.mxu0 0.0
    %789 = vmatprep.subr.mxu0 0.0
    %790 = vmatpush2.msra.mxu0 0.0
    %791 = vmatprep.subr.mxu0 0.0
    %792 = vmatpush2.msra.mxu0 0.0
    %793 = vmatprep.subr.mxu0 0.0
    %794 = vmatpush2.msra.mxu0 0.0
    %795 = vmatprep.subr.mxu0 0.0
    %796 = vmatpush2.msra.mxu0 0.0
    %797 = vmatprep.subr.mxu0 0.0
    %798 = vmatpush2.msra.mxu0 0.0
    %799 = vmatprep.subr.mxu0 0.0
    %800 = vmatpush2.msra.mxu0 0.0
    %801 = vmatprep.subr.mxu0 0.0
    %802 = vmatpush2.msra.mxu0 0.0
    %803 = vmatprep.subr.mxu0 0.0
    %804 = vmatpush2.msra.mxu0 0.0
    %805 = vmatprep.subr.mxu0 0.0
    %806 = vmatpush2.msra.mxu0 0.0
    %807 = vmatprep.subr.mxu0 0.0
    %808 = vmatpush2.msra.mxu0 0.0
    %809 = vmatprep.subr.mxu0 0.0
    %810 = vmatpush2.msra.mxu0 0.0
    %811 = vmatprep.subr.mxu0 0.0
    %812 = vmatpush2.msra.mxu0 0.0
    %813 = vmatprep.subr.mxu0 0.0
    %814 = vmatpush2.msra.mxu0 0.0
    %815 = vmatprep.subr.mxu0 0.0
    %816 = vmatpush2.msra.mxu0 0.0
    %817 = vmatprep.mubr.f32.mxu0 0.0
    %818 = vmatmul.mubr.f32.gmra.mxu0 %v751
    %v819 = vpop.f32.mrf.mxu0
    %v820 = vadd.f32 %v41, %v819
    %v821 = vpop.f32.mrf.mxu0
    %822 = vdwg.mxu0
    %v823 = vxor.u32 %v820, 2147483648
    %v824 = vmul.f32 %v823, 1.442695
    %v825 = vpow.pop %v824
    %v826 = vadd.f32 %v825, 1.0
    %v827 = vrcp.pop %v826
    %v828 = vmul.f32 1.0, %v827
    %v829 = vmul.f32 %v828, 2.0
    %v830 = vsub.f32 %v829, 1.0
    %v831 = vmul.f32 %v828, %v741
    %833 = vrot.lane.b32.xlu0 %v830, 32
    %v834 = vpop.permute.xlu0 %833
    %v836 = vmul.f32 %v828, %v834
    %838 = vrot.lane.b32.xlu0 %v836, 32
    %v839 = vpop.permute.xlu0 %838
    %v841 = vadd.f32 %v831, %v839
    %v842 = vtanh.pop %v841
    %844 = vrot.lane.b32.xlu0 %v842, 32
    %v845 = vpop.permute.xlu0 %844
    %v847 = vmul.f32 %v828, %v845
    %849 = vrot.lane.b32.xlu0 %v247, 96
    %v850 = vpop.permute.xlu0 %849
    %852 = vrot.lane.b32.xlu0 %v447, 32
    %v853 = vpop.permute.xlu0 %852
    %856 = vrot.lane.b32.xlu0 %v647, 96
    %v857 = vpop.permute.xlu0 %856
    %860 = vrot.lane.b32.xlu0 %v847, 32
    %v861 = vpop.permute.xlu0 %860
    %v863 = vsel %vm45, %v150, %v850
    %vm864 = vcmask 523264
    %v865 = vsel %vm864, %v863, %v347
    %vm866 = vcmask 785408
    %v867 = vsel %vm866, %v865, %v853
    %v868 = vsel %vm45, %v550, %v857
    %v869 = vsel %vm864, %v868, %v747
    %v870 = vsel %vm866, %v869, %v861
    %v873 = vcombine.low %v867, %v870
    %v875 = vunpack.c.l.s4 1983009808
    %v876 = vunpack.c.0.s8 %v875
    %v877 = vlaneseq
    %v878 = vshrl.u32 %v877, 7
    %v879 = vsub.s32 %v876, %v878
    %v880 = vrot.slane %v873, %v879
    %882 = vst [vmem:[#allocation5] sm:$0xf] %v880
    // Predicated region
    $region22: #{tpu_custom_call.1} parent=1 // pred_check
      _
    $region23: #{tpu_custom_call.1} parent=1 // pred_check_branch
      %884 = sbr.rel (0) target = $region25
    $region24: #{tpu_custom_call.1} parent=1 // pred_region
      %s886 = ssub.s32 64, 64
      %887 = vsyncadd [#allocation4], %s886
      %s889 = sshll.u32 [#allocation5], 4
      %s890 = int_to_ptr.vmem [resolvable:$true] %s889
      %892 = dma.vmem_to_hbm [thread:$0]  %s890, 64, %s4, [#allocation4]
    $region25: #{tpu_custom_call.1} parent=1 // pred_fallthru
      _
    // Predicated region
    $region26: #{tpu_custom_call.1} parent=1 // pred_check
      _
    $region27: #{tpu_custom_call.1} parent=1 // pred_check_branch
      %894 = sbr.rel (0) target = $region29
    $region28: #{tpu_custom_call.1} parent=1 // pred_region
      %895 = dma.done [#allocation4], 64
    $region29: #{tpu_custom_call.1} parent=1 // pred_fallthru
      _
    %896 = vsyncpa [#allocation3], 1
    %897 = vsyncpa [#allocation4], 1

</llo_original>
